<compile_context>
chip_gen: v7x
topology: tpu7x:2x2x1
jax: 0.10.0
libtpu: 0.0.40
codegen_flags: <defaults>
</compile_context>

<pallas_src>
import functools
import math

import jax
import jax.numpy as jnp
from jax.experimental import pallas as pl
from jax.experimental.pallas import tpu as pltpu


def _round_up(x, m):
    return ((x + m - 1) // m) * m


def _has_bf16_eup():
    # v6e / v7x have a bf16 EUP/VPU path; v5e (and older) do not.
    try:
        kind = jax.devices()[0].device_kind.lower()
    except Exception:
        return False
    return any(tag in kind for tag in ("v6", "v7", "7x"))


def critic_kernel(x_ref, w1_ref, w2_ref, wv_ref, bias_ref, o_ref, *,
                  fc1, fc2, b2_off, bv_off, bf16_act):
    # Packed bias row [b1 | b2 | bv]; all segment starts are 128-lane aligned.
    b1 = bias_ref[:, 0:fc1]                      # (1, fc1) f32
    b2 = bias_ref[:, b2_off:b2_off + fc2]        # (1, fc2) f32
    bv = bias_ref[:, bv_off:bv_off + 1]          # (1, 1)   f32

    # fc1: bf16 x bf16 MXU matmul, f32 accumulate, f32 bias add.
    x = x_ref[...].astype(jnp.bfloat16)
    s1 = jnp.dot(x, w1_ref[...], preferred_element_type=jnp.float32) + b1
    if bf16_act:
        h1 = jnp.tanh(s1.astype(jnp.bfloat16))              # bf16 EUP (v6e/v7x)
    else:
        h1 = jnp.tanh(s1).astype(jnp.bfloat16)               # f32 EUP (v5e), bf16 spill

    # fc2
    s2 = jnp.dot(h1, w2_ref[...], preferred_element_type=jnp.float32) + b2
    if bf16_act:
        h2 = jnp.tanh(s2.astype(jnp.bfloat16)).astype(jnp.float32)
    else:
        h2 = jnp.tanh(s2)                                     # (tb, fc2) f32

    # v head: 1-wide output -> VPU multiply + lane (XLU) reduction, f32 math.
    wv_row = wv_ref[...].astype(jnp.float32)                  # (1, fc2)
    v = jnp.sum(h2 * wv_row, axis=-1) + bv                    # (tb,) + (1,1) -> (1, tb)

    tb = o_ref.shape[-1]
    # Lane-dense store: one (1, 1, tb) row per grid step (unmasked vst / dense DMA).
    o_ref[...] = v.reshape(1, 1, tb).astype(o_ref.dtype)


def _pick_batch_tile(B):
    # B is already a multiple of 8 here.
    if B < 256:
        return B                      # single full block
    tb = 512                          # big tile amortizes per-grid-step overhead
    while tb > 128 and pl.cdiv(B, tb) < 2:
        tb //= 2                      # guarantee >= 2 grid steps (v7x megacore)
    return tb


def discrete_critic_forward(state, w1, b1, w2, b2, wv, bv):
    """state: (B, input_dims) f32; w1: (in, fc1); w2: (fc1, fc2); wv: (fc2, 1)."""
    state = state.astype(jnp.float32)
    B, input_dims = state.shape
    fc1 = w1.shape[1]
    fc2 = w2.shape[1]

    # bf16 weight storage (HBM->VMEM traffic dominated regime).
    w1_bf = w1.astype(jnp.bfloat16)
    w2_bf = w2.astype(jnp.bfloat16)
    wv_row = wv.reshape(1, fc2).astype(jnp.bfloat16)

    # One packed f32 bias row, each segment padded to a 128-lane boundary so the
    # in-kernel slices are lane-aligned for arbitrary fc1/fc2.
    b2_off = _round_up(fc1, 128)
    bv_off = b2_off + _round_up(fc2, 128)
    packed_len = bv_off + 128
    bias = jnp.zeros((1, packed_len), jnp.float32)
    bias = bias.at[:, 0:fc1].set(b1.reshape(1, fc1).astype(jnp.float32))
    bias = bias.at[:, b2_off:b2_off + fc2].set(b2.reshape(1, fc2).astype(jnp.float32))
    bias = bias.at[:, bv_off:bv_off + 1].set(bv.reshape(1, 1).astype(jnp.float32))

    # Only pad to the 8-sublane boundary (<= 7 rows) for odd batch sizes; the last
    # partial batch block is otherwise handled by Pallas.  Safe ONLY because rows
    # are fully independent (tanh / lane reduce are row-local) and padded output
    # rows are sliced off below -- do not add cross-row reductions in the kernel.
    if B % 8 != 0:
        state = jnp.pad(state, ((0, (-B) % 8), (0, 0)))
    Bw = state.shape[0]

    tb = _pick_batch_tile(Bw)
    nb = pl.cdiv(Bw, tb)

    bf16_act = _has_bf16_eup()
    kernel = functools.partial(
        critic_kernel, fc1=fc1, fc2=fc2, b2_off=b2_off, bv_off=bv_off,
        bf16_act=bf16_act)

    full = lambda a: pl.BlockSpec(a.shape, lambda i: (0,) * a.ndim)  # resident block

    out = pl.pallas_call(
        kernel,
        out_shape=jax.ShapeDtypeStruct((nb, 1, tb), jnp.float32),
        grid=(nb,),
        in_specs=[
            pl.BlockSpec((tb, input_dims), lambda i: (i, 0)),  # state tile
            full(w1_bf),                                       # fetched once across grid
            full(w2_bf),
            full(wv_row),
            full(bias),
        ],
        out_specs=pl.BlockSpec((1, 1, tb), lambda i: (i, 0, 0)),  # lane-dense row
        compiler_params=pltpu.CompilerParams(
            dimension_semantics=("parallel",),   # batch tiles are independent
            vmem_limit_bytes=16 << 20,
        ),
    )(state, w1_bf, w2_bf, wv_row, bias)

    # TODO(synk): for tight RL loops at B~8, hide the cold ~600 KiB weight DMA with a
    # cross-call prefetch (pl.ANY weights + semaphore/VMEM outputs from a preceding
    # pallas_call); on v7x additionally consider fp8(e4m3) weights + per-tensor scale.
    return out.reshape(nb * tb)[:B].reshape(B, 1)


def init_linear_params(key, fan_in, fan_out):
    # PyTorch nn.Linear default init: U(-1/sqrt(fan_in), 1/sqrt(fan_in)).
    kw, kb = jax.random.split(key)
    bound = 1.0 / math.sqrt(fan_in)
    w = jax.random.uniform(kw, (fan_in, fan_out), jnp.float32, -bound, bound)
    b = jax.random.uniform(kb, (1, fan_out), jnp.float32, -bound, bound)
    return w, b


if __name__ == "__main__":
    key = jax.random.PRNGKey(0)
    k_state, k1, k2, k3 = jax.random.split(key, 4)

    batch = 8
    input_dims = 32
    fc1_dims = 1024
    fc2_dims = 256

    state = jax.random.normal(k_state, (batch, input_dims), jnp.float32)

    w1, b1 = init_linear_params(k1, input_dims, fc1_dims)
    w2, b2 = init_linear_params(k2, fc1_dims, fc2_dims)
    wv, bv = init_linear_params(k3, fc2_dims, 1)

    v = discrete_critic_forward(state, w1, b1, w2, b2, wv, bv)
    v = jax.block_until_ready(v)

    # Reference in plain JAX using the identical bf16-weight / f32-accumulate recipe
    # (note: intentionally checks the bf16 recipe, not exact f32 nn.Linear semantics).
    bf16_act = _has_bf16_eup()
    w1_bf = w1.astype(jnp.bfloat16)
    w2_bf = w2.astype(jnp.bfloat16)
    wv_row = wv.reshape(1, fc2_dims).astype(jnp.bfloat16)
    xb = state.astype(jnp.bfloat16)
    s1 = jnp.dot(xb, w1_bf, preferred_element_type=jnp.float32) + b1
    h1 = (jnp.tanh(s1.astype(jnp.bfloat16)) if bf16_act
          else jnp.tanh(s1).astype(jnp.bfloat16))
    s2 = jnp.dot(h1, w2_bf, preferred_element_type=jnp.float32) + b2
    h2 = (jnp.tanh(s2.astype(jnp.bfloat16)).astype(jnp.float32) if bf16_act
          else jnp.tanh(s2))
    ref = jnp.sum(h2 * wv_row.astype(jnp.float32), axis=-1, keepdims=True) + bv.reshape(1, 1)

    assert v.shape == (batch, 1)
    assert jnp.allclose(v, ref, atol=2e-2, rtol=2e-2)

    print("KERNEL_OK")
</pallas_src>

<mosaic_0001>
module attributes {stable_mosaic.version = 11 : i64} {
  func.func @critic_kernel(%arg0: i32, %arg1: memref<8x32xf32, #tpu.memory_space<vmem>>, %arg2: memref<32x1024xbf16, #tpu.memory_space<vmem>>, %arg3: memref<1024x256xbf16, #tpu.memory_space<vmem>>, %arg4: memref<1x256xbf16, #tpu.memory_space<vmem>>, %arg5: memref<1x1408xf32, #tpu.memory_space<vmem>>, %arg6: memref<1x1x8xf32, #tpu.memory_space<vmem>>) attributes {dimension_semantics = [#tpu.dimension_semantics<parallel>], iteration_bounds = array<i64: 1>, scalar_prefetch = 0 : i64, scratch_operands = 0 : i64, tpu.core_type = #tpu.core_type<tc>, window_params = [{transform_indices = @transform_0, window_bounds = array<i64: 8, 32>}, {pipeline_mode = #tpu.pipeline_mode<synchronous>, transform_indices = @transform_1, window_bounds = array<i64: 32, 1024>}, {pipeline_mode = #tpu.pipeline_mode<synchronous>, transform_indices = @transform_2, window_bounds = array<i64: 1024, 256>}, {pipeline_mode = #tpu.pipeline_mode<synchronous>, transform_indices = @transform_3, window_bounds = array<i64: 1, 256>}, {pipeline_mode = #tpu.pipeline_mode<synchronous>, transform_indices = @transform_4, window_bounds = array<i64: 1, 1408>}, {transform_indices = @transform_5, window_bounds = array<i64: 1, 1, 8>}]} {
    %c0 = arith.constant 0 : index
    %c0_0 = arith.constant 0 : index
    %0 = vector.load %arg5[%c0, %c0_0] : memref<1x1408xf32, #tpu.memory_space<vmem>>, vector<1x1024xf32>
    %c0_1 = arith.constant 0 : index
    %c1024 = arith.constant 1024 : index
    %1 = vector.load %arg5[%c0_1, %c1024] : memref<1x1408xf32, #tpu.memory_space<vmem>>, vector<1x256xf32>
    %c0_2 = arith.constant 0 : index
    %c1280 = arith.constant 1280 : index
    %2 = vector.load %arg5[%c0_2, %c1280] : memref<1x1408xf32, #tpu.memory_space<vmem>>, vector<1x1xf32>
    %c0_3 = arith.constant 0 : index
    %c0_4 = arith.constant 0 : index
    %3 = vector.load %arg1[%c0_3, %c0_4] : memref<8x32xf32, #tpu.memory_space<vmem>>, vector<8x32xf32>
    %4 = arith.truncf %3 : vector<8x32xf32> to vector<8x32xbf16>
    %c0_5 = arith.constant 0 : index
    %c0_6 = arith.constant 0 : index
    %5 = vector.load %arg2[%c0_5, %c0_6] : memref<32x1024xbf16, #tpu.memory_space<vmem>>, vector<32x1024xbf16>
    %cst = arith.constant dense<0.000000e+00> : vector<8x1024xf32>
    %6 = tpu.matmul %4, %5, %cst {dimension_numbers = #tpu.dot_dimension_numbers<[1], [0], [0], [1], [0, 0, 1, 1], [], []>} : vector<8x32xbf16>, vector<32x1024xbf16>, vector<8x1024xf32> -> vector<8x1024xf32>
    %7 = vector.broadcast %0 : vector<1x1024xf32> to vector<8x1024xf32>
    %8 = arith.addf %6, %7 : vector<8x1024xf32>
    %9 = math.tanh %8 : vector<8x1024xf32>
    %10 = arith.truncf %9 : vector<8x1024xf32> to vector<8x1024xbf16>
    %c0_7 = arith.constant 0 : index
    %c0_8 = arith.constant 0 : index
    %11 = vector.load %arg3[%c0_7, %c0_8] : memref<1024x256xbf16, #tpu.memory_space<vmem>>, vector<1024x256xbf16>
    %cst_9 = arith.constant dense<0.000000e+00> : vector<8x256xf32>
    %12 = tpu.matmul %10, %11, %cst_9 {dimension_numbers = #tpu.dot_dimension_numbers<[1], [0], [0], [1], [0, 0, 1, 1], [], []>} : vector<8x1024xbf16>, vector<1024x256xbf16>, vector<8x256xf32> -> vector<8x256xf32>
    %13 = vector.broadcast %1 : vector<1x256xf32> to vector<8x256xf32>
    %14 = arith.addf %12, %13 : vector<8x256xf32>
    %15 = math.tanh %14 : vector<8x256xf32>
    %c0_10 = arith.constant 0 : index
    %c0_11 = arith.constant 0 : index
    %16 = vector.load %arg4[%c0_10, %c0_11] : memref<1x256xbf16, #tpu.memory_space<vmem>>, vector<1x256xbf16>
    %17 = arith.extf %16 : vector<1x256xbf16> to vector<1x256xf32>
    %18 = vector.broadcast %17 : vector<1x256xf32> to vector<8x256xf32>
    %19 = arith.mulf %15, %18 : vector<8x256xf32>
    %cst_12 = arith.constant dense<0.000000e+00> : vector<8xf32>
    %20 = vector.multi_reduction <add>, %19, %cst_12 [1] : vector<8x256xf32> to vector<8xf32>
    %21 = vector.shape_cast %20 : vector<8xf32> to vector<1x8xf32>
    %22 = vector.broadcast %2 : vector<1x1xf32> to vector<1x8xf32>
    %23 = arith.addf %21, %22 : vector<1x8xf32>
    %24 = vector.shape_cast %23 : vector<1x8xf32> to vector<1x1x8xf32>
    %c0_13 = arith.constant 0 : index
    %c0_14 = arith.constant 0 : index
    %c0_15 = arith.constant 0 : index
    %25 = vector.load %arg6[%c0_13, %c0_14, %c0_15] : memref<1x1x8xf32, #tpu.memory_space<vmem>>, vector<1x1x8xf32>
    tpu.vector_store %arg6[%c0_13, %c0_14, %c0_15], %24 {strides = array<i32>} : memref<1x1x8xf32, #tpu.memory_space<vmem>>, vector<1x1x8xf32>,
    return
  }
  func.func @transform_0(%arg0: i32) -> (i32, i32) {
    %c0_i32 = arith.constant 0 : i32
    %c0_i32_0 = arith.constant 0 : i32
    return %arg0, %c0_i32 : i32, i32
  }
  func.func @transform_1(%arg0: i32) -> (i32, i32) {
    %c0_i32 = arith.constant 0 : i32
    %c0_i32_0 = arith.constant 0 : i32
    %c0_i32_1 = arith.constant 0 : i32
    return %c0_i32, %c0_i32_0 : i32, i32
  }
  func.func @transform_2(%arg0: i32) -> (i32, i32) {
    %c0_i32 = arith.constant 0 : i32
    %c0_i32_0 = arith.constant 0 : i32
    %c0_i32_1 = arith.constant 0 : i32
    return %c0_i32, %c0_i32_0 : i32, i32
  }
  func.func @transform_3(%arg0: i32) -> (i32, i32) {
    %c0_i32 = arith.constant 0 : i32
    %c0_i32_0 = arith.constant 0 : i32
    %c0_i32_1 = arith.constant 0 : i32
    return %c0_i32, %c0_i32_0 : i32, i32
  }
  func.func @transform_4(%arg0: i32) -> (i32, i32) {
    %c0_i32 = arith.constant 0 : i32
    %c0_i32_0 = arith.constant 0 : i32
    %c0_i32_1 = arith.constant 0 : i32
    return %c0_i32, %c0_i32_0 : i32, i32
  }
  func.func @transform_5(%arg0: i32) -> (i32, i32, i32) {
    %c0_i32 = arith.constant 0 : i32
    %c0_i32_0 = arith.constant 0 : i32
    %c0_i32_1 = arith.constant 0 : i32
    return %arg0, %c0_i32, %c0_i32_0 : i32, i32, i32
  }
}

</mosaic_0001>

<llo_original>
// kernel: tpu_custom_call.1
$region0: #{tpu_custom_call.1}
  #allocation0 [shape = 'u32[]', space=smem, size = 0x4, offset = 0x4, fixed_abs, tag = 'smem constant byte address 0x4 - core index']
  #allocation1 [shape = 'u32[144,128]{1,0:T(1,128)}', space=vmem, size = 0x12000, scoped, tag = 'internal scratch']
  %s0 = inlined_call_operand.hbm [shape: f32[8,32], index: 0, kind: input, shape index: {}]
  %s1 = inlined_call_operand.hbm [shape: bf16[32,1024], index: 1, kind: input, shape index: {}]
  %s2 = inlined_call_operand.hbm [shape: bf16[1024,256], index: 2, kind: input, shape index: {}]
  %s3 = inlined_call_operand.vmem [shape: bf16[1,256], index: 3, kind: input, shape index: {}]
  %s4 = inlined_call_operand.vmem [shape: f32[1,1408], index: 4, kind: input, shape index: {}]
  %s5 = inlined_call_operand.hbm [shape: f32[1,1,8], index: 5, kind: output, shape index: {}]
  %s6 = sld [smem:[#allocation0]]
  $region42: #{tpu_custom_call.1} parent=0
    _
  %s8 = ssub.s32 1, %s6
  %s9 = scalar_select 0, %s8, %s6
  $region1: #{tpu_custom_call.1} parent=0
    #allocation2 [shape = 'u8[4096]{0}', space=vmem, size = 0x1000, scoped, tag = 'input window, operand 0, single buffered']
    #allocation3 [shape = 's32[1]{0}', space=sflag, size = 0x4, scoped, tag = 'scoped memory for tpu_custom_call.1']
    #allocation4 [shape = 's32[1]{0}', space=sflag, size = 0x4, scoped, tag = 'scoped memory for tpu_custom_call.1']
    #allocation5 [shape = 'u8[65536]{0}', space=vmem, size = 0x10000, scoped, tag = 'input window, operand 1, single buffered']
    #allocation6 [shape = 's32[1]{0}', space=sflag, size = 0x4, scoped, tag = 'scoped memory for tpu_custom_call.1']
    #allocation7 [shape = 'u8[524288]{0}', space=vmem, size = 0x80000, scoped, tag = 'input window, operand 2, single buffered']
    #allocation8 [shape = 'u8[512]{0}', space=vmem, size = 0x400, scoped, tag = 'output window, operand 0, single buffered']
    %10 = vsyncpa [#allocation3], 0
    %11 = vsyncpa [#allocation6], 0
    %12 = vsyncpa [#allocation4], 0
    // Predicated region
    $region2: #{tpu_custom_call.1} parent=1 // pred_check
      _
    $region3: #{tpu_custom_call.1} parent=1 // pred_check_branch
      %14 = sbr.rel (0) target = $region5
    $region4: #{tpu_custom_call.1} parent=1 // pred_region
      %s16 = ssub.s32 128, 128
      %17 = vsyncadd [#allocation3], %s16
      %s19 = sshll.u32 [#allocation2], 4
      %s20 = int_to_ptr.vmem [resolvable:$true] %s19
      %22 = dma.hbm_to_vmem [thread:$0]  %s0, 128, %s20, [#allocation3]
    $region5: #{tpu_custom_call.1} parent=1 // pred_fallthru
      _
    // Predicated region
    $region6: #{tpu_custom_call.1} parent=1 // pred_check
      _
    $region7: #{tpu_custom_call.1} parent=1 // pred_check_branch
      %24 = sbr.rel (0) target = $region9
    $region8: #{tpu_custom_call.1} parent=1 // pred_region
      %s26 = ssub.s32 2048, 2048
      %27 = vsyncadd [#allocation6], %s26
      %s28 = sshll.u32 [#allocation5], 4
      %s29 = int_to_ptr.vmem [resolvable:$true] %s28
      %34 = dma.hbm_to_vmem [thread:$0]  %s1, 2048, %s29, [#allocation6], 512, 512, 32
    $region9: #{tpu_custom_call.1} parent=1 // pred_fallthru
      _
    // Predicated region
    $region10: #{tpu_custom_call.1} parent=1 // pred_check
      _
    $region11: #{tpu_custom_call.1} parent=1 // pred_check_branch
      %36 = sbr.rel (0) target = $region13
    $region12: #{tpu_custom_call.1} parent=1 // pred_region
      %s38 = ssub.s32 16384, 16384
      %39 = vsyncadd [#allocation6], %s38
      %s40 = sshll.u32 [#allocation7], 4
      %s41 = int_to_ptr.vmem [resolvable:$true] %s40
      %46 = dma.hbm_to_vmem [thread:$0]  %s2, 16384, %s41, [#allocation6], 128, 128, 8
    $region13: #{tpu_custom_call.1} parent=1 // pred_fallthru
      _
    // Predicated region
    $region14: #{tpu_custom_call.1} parent=1 // pred_check
      _
    $region15: #{tpu_custom_call.1} parent=1 // pred_check_branch
      %48 = sbr.rel (0) target = $region17
    $region16: #{tpu_custom_call.1} parent=1 // pred_region
      _
    $region17: #{tpu_custom_call.1} parent=1 // pred_fallthru
      _
    // Predicated region
    $region18: #{tpu_custom_call.1} parent=1 // pred_check
      _
    $region19: #{tpu_custom_call.1} parent=1 // pred_check_branch
      %50 = sbr.rel (0) target = $region21
    $region20: #{tpu_custom_call.1} parent=1 // pred_region
      _
    $region21: #{tpu_custom_call.1} parent=1 // pred_fallthru
      _
    // Predicated region
    $region22: #{tpu_custom_call.1} parent=1 // pred_check
      _
    $region23: #{tpu_custom_call.1} parent=1 // pred_check_branch
      %52 = sbr.rel (0) target = $region25
    $region24: #{tpu_custom_call.1} parent=1 // pred_region
      %53 = dma.done [#allocation3], 128
    $region25: #{tpu_custom_call.1} parent=1 // pred_fallthru
      _
    // Predicated region
    $region26: #{tpu_custom_call.1} parent=1 // pred_check
      _
    $region27: #{tpu_custom_call.1} parent=1 // pred_check_branch
      %55 = sbr.rel (0) target = $region29
    $region28: #{tpu_custom_call.1} parent=1 // pred_region
      %56 = dma.done [#allocation6], 2048
    $region29: #{tpu_custom_call.1} parent=1 // pred_fallthru
      _
    // Predicated region
    $region30: #{tpu_custom_call.1} parent=1 // pred_check
      _
    $region31: #{tpu_custom_call.1} parent=1 // pred_check_branch
      %58 = sbr.rel (0) target = $region33
    $region32: #{tpu_custom_call.1} parent=1 // pred_region
      %59 = dma.done [#allocation6], 16384
    $region33: #{tpu_custom_call.1} parent=1 // pred_fallthru
      _
    %v61 = vld [vmem:[%s4] sm:$0xff]
    %v62 = vld [vmem:[%s4 + $0x8] sm:$0x3]
    %v63 = vld [vmem:[%s4 + $0xa] sm:$0x1]
    %v64 = vld [vmem:[#allocation2] sm:$0xff]
    %v65 = vpack.c.bf16 %v64, %v64
    %v66 = vld [vmem:[#allocation5] sm:$0xff]
    %v67 = vld [vmem:[#allocation5 + $0x8] sm:$0xff]
    %v68 = vld [vmem:[#allocation5 + $0x10] sm:$0xff]
    %v69 = vld [vmem:[#allocation5 + $0x18] sm:$0xff]
    %v70 = vld [vmem:[#allocation5 + $0x20] sm:$0xff]
    %v71 = vld [vmem:[#allocation5 + $0x28] sm:$0xff]
    %v72 = vld [vmem:[#allocation5 + $0x30] sm:$0xff]
    %v73 = vld [vmem:[#allocation5 + $0x38] sm:$0xff]
    %v74 = vld [vmem:[#allocation5 + $0x40] sm:$0xff]
    %v75 = vld [vmem:[#allocation5 + $0x48] sm:$0xff]
    %v76 = vld [vmem:[#allocation5 + $0x50] sm:$0xff]
    %v77 = vld [vmem:[#allocation5 + $0x58] sm:$0xff]
    %v78 = vld [vmem:[#allocation5 + $0x60] sm:$0xff]
    %v79 = vld [vmem:[#allocation5 + $0x68] sm:$0xff]
    %v80 = vld [vmem:[#allocation5 + $0x70] sm:$0xff]
    %v81 = vld [vmem:[#allocation5 + $0x78] sm:$0xff]
    %v83 = vlaneseq
    %v84 = vshrl.u32 %v83, 7
    %v85 = vsub.s32 0, %v84
    %v86 = vrot.slane %v61, %v85
    %v87 = vlaneseq
    %v88 = vshrl.u32 %v87, 7
    %v89 = vsub.s32 1, %v88
    %v90 = vrot.slane %v61, %v89
    %v91 = vlaneseq
    %v92 = vshrl.u32 %v91, 7
    %v93 = vsub.s32 2, %v92
    %v94 = vrot.slane %v61, %v93
    %v95 = vlaneseq
    %v96 = vshrl.u32 %v95, 7
    %v97 = vsub.s32 3, %v96
    %v98 = vrot.slane %v61, %v97
    %v99 = vlaneseq
    %v100 = vshrl.u32 %v99, 7
    %v101 = vsub.s32 4, %v100
    %v102 = vrot.slane %v61, %v101
    %v103 = vlaneseq
    %v104 = vshrl.u32 %v103, 7
    %v105 = vsub.s32 5, %v104
    %v106 = vrot.slane %v61, %v105
    %v107 = vlaneseq
    %v108 = vshrl.u32 %v107, 7
    %v109 = vsub.s32 6, %v108
    %v110 = vrot.slane %v61, %v109
    %v111 = vlaneseq
    %v112 = vshrl.u32 %v111, 7
    %v113 = vsub.s32 7, %v112
    %v114 = vrot.slane %v61, %v113
    %v139 = vunpack.c.l.b16 %v66
    %v140 = vunpack.c.h.b16 %v66
    %v141 = vunpack.c.l.b16 %v67
    %v142 = vunpack.c.h.b16 %v67
    %v143 = vunpack.c.l.b16 %v68
    %v144 = vunpack.c.h.b16 %v68
    %v145 = vunpack.c.l.b16 %v69
    %v146 = vunpack.c.h.b16 %v69
    %v147 = vunpack.c.l.b16 %v70
    %v148 = vunpack.c.h.b16 %v70
    %v149 = vunpack.c.l.b16 %v71
    %v150 = vunpack.c.h.b16 %v71
    %v151 = vunpack.c.l.b16 %v72
    %v152 = vunpack.c.h.b16 %v72
    %v153 = vunpack.c.l.b16 %v73
    %v154 = vunpack.c.h.b16 %v73
    %v155 = vunpack.c.l.b16 %v74
    %v156 = vunpack.c.h.b16 %v74
    %v157 = vunpack.c.l.b16 %v75
    %v158 = vunpack.c.h.b16 %v75
    %v159 = vunpack.c.l.b16 %v76
    %v160 = vunpack.c.h.b16 %v76
    %v161 = vunpack.c.l.b16 %v77
    %v162 = vunpack.c.h.b16 %v77
    %v163 = vunpack.c.l.b16 %v78
    %v164 = vunpack.c.h.b16 %v78
    %v165 = vunpack.c.l.b16 %v79
    %v166 = vunpack.c.h.b16 %v79
    %v167 = vunpack.c.l.b16 %v80
    %v168 = vunpack.c.h.b16 %v80
    %v169 = vunpack.c.l.b16 %v81
    %v170 = vunpack.c.h.b16 %v81
    %v171 = vpack.c.b16 %v147, %v139
    %v172 = vpack.c.b16 %v148, %v140
    %v173 = vpack.c.b16 %v149, %v141
    %v174 = vpack.c.b16 %v150, %v142
    %v175 = vpack.c.b16 %v151, %v143
    %v176 = vpack.c.b16 %v152, %v144
    %v177 = vpack.c.b16 %v153, %v145
    %v178 = vpack.c.b16 %v154, %v146
    %v179 = vpack.c.b16 %v163, %v155
    %v180 = vpack.c.b16 %v164, %v156
    %v181 = vpack.c.b16 %v165, %v157
    %v182 = vpack.c.b16 %v166, %v158
    %v183 = vpack.c.b16 %v167, %v159
    %v184 = vpack.c.b16 %v168, %v160
    %v185 = vpack.c.b16 %v169, %v161
    %v186 = vpack.c.b16 %v170, %v162
    %vm203 = vcmask 261120
    %v205 = vsel %vm203, %v65, 0
    %207 = vmatprep.subr.bf16.mxu0 %v172
    %208 = vmatpush1.bf16.msra.mxu0 %v171
    %209 = vmatprep.subr.bf16.mxu0 %v180
    %210 = vmatpush1.bf16.msra.mxu0 %v179
    %211 = vmatprep.subr.bf16.mxu0 0
    %212 = vmatpush1.bf16.msra.mxu0 0
    %213 = vmatprep.subr.bf16.mxu0 0
    %214 = vmatpush1.bf16.msra.mxu0 0
    %215 = vmatprep.subr.bf16.mxu0 0
    %216 = vmatpush1.bf16.msra.mxu0 0
    %217 = vmatprep.subr.bf16.mxu0 0
    %218 = vmatpush1.bf16.msra.mxu0 0
    %219 = vmatprep.subr.bf16.mxu0 0
    %220 = vmatpush1.bf16.msra.mxu0 0
    %221 = vmatprep.subr.bf16.mxu0 0
    %222 = vmatpush1.bf16.msra.mxu0 0
    %223 = vmatprep.subr.bf16.mxu0 0
    %224 = vmatpush1.bf16.msra.mxu0 0
    %225 = vmatprep.subr.bf16.mxu0 0
    %226 = vmatpush1.bf16.msra.mxu0 0
    %227 = vmatprep.subr.bf16.mxu0 0
    %228 = vmatpush1.bf16.msra.mxu0 0
    %229 = vmatprep.subr.bf16.mxu0 0
    %230 = vmatpush1.bf16.msra.mxu0 0
    %231 = vmatprep.subr.bf16.mxu0 0
    %232 = vmatpush1.bf16.msra.mxu0 0
    %233 = vmatprep.subr.bf16.mxu0 0
    %234 = vmatpush1.bf16.msra.mxu0 0
    %235 = vmatprep.subr.bf16.mxu0 0
    %236 = vmatpush1.bf16.msra.mxu0 0
    %237 = vmatprep.subr.bf16.mxu0 0
    %238 = vmatpush1.bf16.msra.mxu0 0
    %239 = vmatprep.mubr.bf16.mxu0 0
    %240 = vmatmul.mubr.bf16.gmra.mrb[0].mxu0 %v205
    %v241 = vpop.f32.mrb[0].mxu0
    %v242 = vadd.f32 %v86, %v241
    %v243 = vpop.f32.mrb[0].mxu0
    %v244 = vadd.f32 %v90, %v243
    %v245 = vpop.f32.mrb[0].mxu0
    %v246 = vpop.f32.mrb[0].mxu0
    %247 = vdwg.mxu0
    %248 = vmatprep.subr.bf16.mxu0 %v174
    %249 = vmatpush1.bf16.msra.mxu0 %v173
    %250 = vmatprep.subr.bf16.mxu0 %v182
    %251 = vmatpush1.bf16.msra.mxu0 %v181
    %252 = vmatprep.subr.bf16.mxu0 0
    %253 = vmatpush1.bf16.msra.mxu0 0
    %254 = vmatprep.subr.bf16.mxu0 0
    %255 = vmatpush1.bf16.msra.mxu0 0
    %256 = vmatprep.subr.bf16.mxu0 0
    %257 = vmatpush1.bf16.msra.mxu0 0
    %258 = vmatprep.subr.bf16.mxu0 0
    %259 = vmatpush1.bf16.msra.mxu0 0
    %260 = vmatprep.subr.bf16.mxu0 0
    %261 = vmatpush1.bf16.msra.mxu0 0
    %262 = vmatprep.subr.bf16.mxu0 0
    %263 = vmatpush1.bf16.msra.mxu0 0
    %264 = vmatprep.subr.bf16.mxu0 0
    %265 = vmatpush1.bf16.msra.mxu0 0
    %266 = vmatprep.subr.bf16.mxu0 0
    %267 = vmatpush1.bf16.msra.mxu0 0
    %268 = vmatprep.subr.bf16.mxu0 0
    %269 = vmatpush1.bf16.msra.mxu0 0
    %270 = vmatprep.subr.bf16.mxu0 0
    %271 = vmatpush1.bf16.msra.mxu0 0
    %272 = vmatprep.subr.bf16.mxu0 0
    %273 = vmatpush1.bf16.msra.mxu0 0
    %274 = vmatprep.subr.bf16.mxu0 0
    %275 = vmatpush1.bf16.msra.mxu0 0
    %276 = vmatprep.subr.bf16.mxu0 0
    %277 = vmatpush1.bf16.msra.mxu0 0
    %278 = vmatprep.subr.bf16.mxu0 0
    %279 = vmatpush1.bf16.msra.mxu0 0
    %280 = vmatprep.mubr.bf16.mxu0 0
    %281 = vmatmul.mubr.bf16.gmra.mrb[0].mxu0 %v205
    %v282 = vpop.f32.mrb[0].mxu0
    %v283 = vadd.f32 %v94, %v282
    %v284 = vpop.f32.mrb[0].mxu0
    %v285 = vadd.f32 %v98, %v284
    %v286 = vpop.f32.mrb[0].mxu0
    %v287 = vpop.f32.mrb[0].mxu0
    %288 = vdwg.mxu0
    %289 = vmatprep.subr.bf16.mxu0 %v176
    %290 = vmatpush1.bf16.msra.mxu0 %v175
    %291 = vmatprep.subr.bf16.mxu0 %v184
    %292 = vmatpush1.bf16.msra.mxu0 %v183
    %293 = vmatprep.subr.bf16.mxu0 0
    %294 = vmatpush1.bf16.msra.mxu0 0
    %295 = vmatprep.subr.bf16.mxu0 0
    %296 = vmatpush1.bf16.msra.mxu0 0
    %297 = vmatprep.subr.bf16.mxu0 0
    %298 = vmatpush1.bf16.msra.mxu0 0
    %299 = vmatprep.subr.bf16.mxu0 0
    %300 = vmatpush1.bf16.msra.mxu0 0
    %301 = vmatprep.subr.bf16.mxu0 0
    %302 = vmatpush1.bf16.msra.mxu0 0
    %303 = vmatprep.subr.bf16.mxu0 0
    %304 = vmatpush1.bf16.msra.mxu0 0
    %305 = vmatprep.subr.bf16.mxu0 0
    %306 = vmatpush1.bf16.msra.mxu0 0
    %307 = vmatprep.subr.bf16.mxu0 0
    %308 = vmatpush1.bf16.msra.mxu0 0
    %309 = vmatprep.subr.bf16.mxu0 0
    %310 = vmatpush1.bf16.msra.mxu0 0
    %311 = vmatprep.subr.bf16.mxu0 0
    %312 = vmatpush1.bf16.msra.mxu0 0
    %313 = vmatprep.subr.bf16.mxu0 0
    %314 = vmatpush1.bf16.msra.mxu0 0
    %315 = vmatprep.subr.bf16.mxu0 0
    %316 = vmatpush1.bf16.msra.mxu0 0
    %317 = vmatprep.subr.bf16.mxu0 0
    %318 = vmatpush1.bf16.msra.mxu0 0
    %319 = vmatprep.subr.bf16.mxu0 0
    %320 = vmatpush1.bf16.msra.mxu0 0
    %321 = vmatprep.mubr.bf16.mxu0 0
    %322 = vmatmul.mubr.bf16.gmra.mrb[0].mxu0 %v205
    %v323 = vpop.f32.mrb[0].mxu0
    %v324 = vadd.f32 %v102, %v323
    %v325 = vpop.f32.mrb[0].mxu0
    %v326 = vadd.f32 %v106, %v325
    %v327 = vpop.f32.mrb[0].mxu0
    %v328 = vpop.f32.mrb[0].mxu0
    %329 = vdwg.mxu0
    %330 = vmatprep.subr.bf16.mxu0 %v178
    %331 = vmatpush1.bf16.msra.mxu0 %v177
    %332 = vmatprep.subr.bf16.mxu0 %v186
    %333 = vmatpush1.bf16.msra.mxu0 %v185
    %334 = vmatprep.subr.bf16.mxu0 0
    %335 = vmatpush1.bf16.msra.mxu0 0
    %336 = vmatprep.subr.bf16.mxu0 0
    %337 = vmatpush1.bf16.msra.mxu0 0
    %338 = vmatprep.subr.bf16.mxu0 0
    %339 = vmatpush1.bf16.msra.mxu0 0
    %340 = vmatprep.subr.bf16.mxu0 0
    %341 = vmatpush1.bf16.msra.mxu0 0
    %342 = vmatprep.subr.bf16.mxu0 0
    %343 = vmatpush1.bf16.msra.mxu0 0
    %344 = vmatprep.subr.bf16.mxu0 0
    %345 = vmatpush1.bf16.msra.mxu0 0
    %346 = vmatprep.subr.bf16.mxu0 0
    %347 = vmatpush1.bf16.msra.mxu0 0
    %348 = vmatprep.subr.bf16.mxu0 0
    %349 = vmatpush1.bf16.msra.mxu0 0
    %350 = vmatprep.subr.bf16.mxu0 0
    %351 = vmatpush1.bf16.msra.mxu0 0
    %352 = vmatprep.subr.bf16.mxu0 0
    %353 = vmatpush1.bf16.msra.mxu0 0
    %354 = vmatprep.subr.bf16.mxu0 0
    %355 = vmatpush1.bf16.msra.mxu0 0
    %356 = vmatprep.subr.bf16.mxu0 0
    %357 = vmatpush1.bf16.msra.mxu0 0
    %358 = vmatprep.subr.bf16.mxu0 0
    %359 = vmatpush1.bf16.msra.mxu0 0
    %360 = vmatprep.subr.bf16.mxu0 0
    %361 = vmatpush1.bf16.msra.mxu0 0
    %362 = vmatprep.mubr.bf16.mxu0 0
    %363 = vmatmul.mubr.bf16.gmra.mrb[0].mxu0 %v205
    %v364 = vpop.f32.mrb[0].mxu0
    %v365 = vadd.f32 %v110, %v364
    %v366 = vpop.f32.mrb[0].mxu0
    %v367 = vadd.f32 %v114, %v366
    %v368 = vpop.f32.mrb[0].mxu0
    %v369 = vpop.f32.mrb[0].mxu0
    %370 = vdwg.mxu0
    %v371 = vtanh.pop %v242
    %v372 = vtanh.pop %v244
    %v373 = vtanh.pop %v283
    %v374 = vtanh.pop %v285
    %v375 = vtanh.pop %v324
    %v376 = vtanh.pop %v326
    %v377 = vtanh.pop %v365
    %v378 = vtanh.pop %v367
    %v379 = vpack.c.bf16 %v371, %v371
    %v380 = vpack.c.bf16 %v372, %v372
    %v381 = vpack.c.bf16 %v373, %v373
    %v382 = vpack.c.bf16 %v374, %v374
    %v383 = vpack.c.bf16 %v375, %v375
    %v384 = vpack.c.bf16 %v376, %v376
    %v385 = vpack.c.bf16 %v377, %v377
    %v386 = vpack.c.bf16 %v378, %v378
    %v387 = vld [vmem:[#allocation7] sm:$0xff]
    %v388 = vld [vmem:[#allocation7 + $0x8] sm:$0xff]
    %v389 = vld [vmem:[#allocation7 + $0x10] sm:$0xff]
    %v390 = vld [vmem:[#allocation7 + $0x18] sm:$0xff]
    %v391 = vld [vmem:[#allocation7 + $0x20] sm:$0xff]
    %v392 = vld [vmem:[#allocation7 + $0x28] sm:$0xff]
    %v393 = vld [vmem:[#allocation7 + $0x30] sm:$0xff]
    %v394 = vld [vmem:[#allocation7 + $0x38] sm:$0xff]
    %v395 = vld [vmem:[#allocation7 + $0x40] sm:$0xff]
    %v396 = vld [vmem:[#allocation7 + $0x48] sm:$0xff]
    %v397 = vld [vmem:[#allocation7 + $0x50] sm:$0xff]
    %v398 = vld [vmem:[#allocation7 + $0x58] sm:$0xff]
    %v399 = vld [vmem:[#allocation7 + $0x60] sm:$0xff]
    %v400 = vld [vmem:[#allocation7 + $0x68] sm:$0xff]
    %v401 = vld [vmem:[#allocation7 + $0x70] sm:$0xff]
    %v402 = vld [vmem:[#allocation7 + $0x78] sm:$0xff]
    %v403 = vld [vmem:[#allocation7 + $0x80] sm:$0xff]
    %v404 = vld [vmem:[#allocation7 + $0x88] sm:$0xff]
    %v405 = vld [vmem:[#allocation7 + $0x90] sm:$0xff]
    %v406 = vld [vmem:[#allocation7 + $0x98] sm:$0xff]
    %v407 = vld [vmem:[#allocation7 + $0xa0] sm:$0xff]
    %v408 = vld [vmem:[#allocation7 + $0xa8] sm:$0xff]
    %v409 = vld [vmem:[#allocation7 + $0xb0] sm:$0xff]
    %v410 = vld [vmem:[#allocation7 + $0xb8] sm:$0xff]
    %v411 = vld [vmem:[#allocation7 + $0xc0] sm:$0xff]
    %v412 = vld [vmem:[#allocation7 + $0xc8] sm:$0xff]
    %v413 = vld [vmem:[#allocation7 + $0xd0] sm:$0xff]
    %v414 = vld [vmem:[#allocation7 + $0xd8] sm:$0xff]
    %v415 = vld [vmem:[#allocation7 + $0xe0] sm:$0xff]
    %v416 = vld [vmem:[#allocation7 + $0xe8] sm:$0xff]
    %v417 = vld [vmem:[#allocation7 + $0xf0] sm:$0xff]
    %v418 = vld [vmem:[#allocation7 + $0xf8] sm:$0xff]
    %v419 = vld [vmem:[#allocation7 + $0x100] sm:$0xff]
    %v420 = vld [vmem:[#allocation7 + $0x108] sm:$0xff]
    %v421 = vld [vmem:[#allocation7 + $0x110] sm:$0xff]
    %v422 = vld [vmem:[#allocation7 + $0x118] sm:$0xff]
    %v423 = vld [vmem:[#allocation7 + $0x120] sm:$0xff]
    %v424 = vld [vmem:[#allocation7 + $0x128] sm:$0xff]
    %v425 = vld [vmem:[#allocation7 + $0x130] sm:$0xff]
    %v426 = vld [vmem:[#allocation7 + $0x138] sm:$0xff]
    %v427 = vld [vmem:[#allocation7 + $0x140] sm:$0xff]
    %v428 = vld [vmem:[#allocation7 + $0x148] sm:$0xff]
    %v429 = vld [vmem:[#allocation7 + $0x150] sm:$0xff]
    %v430 = vld [vmem:[#allocation7 + $0x158] sm:$0xff]
    %v431 = vld [vmem:[#allocation7 + $0x160] sm:$0xff]
    %v432 = vld [vmem:[#allocation7 + $0x168] sm:$0xff]
    %v433 = vld [vmem:[#allocation7 + $0x170] sm:$0xff]
    %v434 = vld [vmem:[#allocation7 + $0x178] sm:$0xff]
    %v435 = vld [vmem:[#allocation7 + $0x180] sm:$0xff]
    %v436 = vld [vmem:[#allocation7 + $0x188] sm:$0xff]
    %v437 = vld [vmem:[#allocation7 + $0x190] sm:$0xff]
    %v438 = vld [vmem:[#allocation7 + $0x198] sm:$0xff]
    %v439 = vld [vmem:[#allocation7 + $0x1a0] sm:$0xff]
    %v440 = vld [vmem:[#allocation7 + $0x1a8] sm:$0xff]
    %v441 = vld [vmem:[#allocation7 + $0x1b0] sm:$0xff]
    %v442 = vld [vmem:[#allocation7 + $0x1b8] sm:$0xff]
    %v443 = vld [vmem:[#allocation7 + $0x1c0] sm:$0xff]
    %v444 = vld [vmem:[#allocation7 + $0x1c8] sm:$0xff]
    %v445 = vld [vmem:[#allocation7 + $0x1d0] sm:$0xff]
    %v446 = vld [vmem:[#allocation7 + $0x1d8] sm:$0xff]
    %v447 = vld [vmem:[#allocation7 + $0x1e0] sm:$0xff]
    %v448 = vld [vmem:[#allocation7 + $0x1e8] sm:$0xff]
    %v449 = vld [vmem:[#allocation7 + $0x1f0] sm:$0xff]
    %v450 = vld [vmem:[#allocation7 + $0x1f8] sm:$0xff]
    %v451 = vld [vmem:[#allocation7 + $0x200] sm:$0xff]
    %v452 = vld [vmem:[#allocation7 + $0x208] sm:$0xff]
    %v453 = vld [vmem:[#allocation7 + $0x210] sm:$0xff]
    %v454 = vld [vmem:[#allocation7 + $0x218] sm:$0xff]
    %v455 = vld [vmem:[#allocation7 + $0x220] sm:$0xff]
    %v456 = vld [vmem:[#allocation7 + $0x228] sm:$0xff]
    %v457 = vld [vmem:[#allocation7 + $0x230] sm:$0xff]
    %v458 = vld [vmem:[#allocation7 + $0x238] sm:$0xff]
    %v459 = vld [vmem:[#allocation7 + $0x240] sm:$0xff]
    %v460 = vld [vmem:[#allocation7 + $0x248] sm:$0xff]
    %v461 = vld [vmem:[#allocation7 + $0x250] sm:$0xff]
    %v462 = vld [vmem:[#allocation7 + $0x258] sm:$0xff]
    %v463 = vld [vmem:[#allocation7 + $0x260] sm:$0xff]
    %v464 = vld [vmem:[#allocation7 + $0x268] sm:$0xff]
    %v465 = vld [vmem:[#allocation7 + $0x270] sm:$0xff]
    %v466 = vld [vmem:[#allocation7 + $0x278] sm:$0xff]
    %v467 = vld [vmem:[#allocation7 + $0x280] sm:$0xff]
    %v468 = vld [vmem:[#allocation7 + $0x288] sm:$0xff]
    %v469 = vld [vmem:[#allocation7 + $0x290] sm:$0xff]
    %v470 = vld [vmem:[#allocation7 + $0x298] sm:$0xff]
    %v471 = vld [vmem:[#allocation7 + $0x2a0] sm:$0xff]
    %v472 = vld [vmem:[#allocation7 + $0x2a8] sm:$0xff]
    %v473 = vld [vmem:[#allocation7 + $0x2b0] sm:$0xff]
    %v474 = vld [vmem:[#allocation7 + $0x2b8] sm:$0xff]
    %v475 = vld [vmem:[#allocation7 + $0x2c0] sm:$0xff]
    %v476 = vld [vmem:[#allocation7 + $0x2c8] sm:$0xff]
    %v477 = vld [vmem:[#allocation7 + $0x2d0] sm:$0xff]
    %v478 = vld [vmem:[#allocation7 + $0x2d8] sm:$0xff]
    %v479 = vld [vmem:[#allocation7 + $0x2e0] sm:$0xff]
    %v480 = vld [vmem:[#allocation7 + $0x2e8] sm:$0xff]
    %v481 = vld [vmem:[#allocation7 + $0x2f0] sm:$0xff]
    %v482 = vld [vmem:[#allocation7 + $0x2f8] sm:$0xff]
    %v483 = vld [vmem:[#allocation7 + $0x300] sm:$0xff]
    %v484 = vld [vmem:[#allocation7 + $0x308] sm:$0xff]
    %v485 = vld [vmem:[#allocation7 + $0x310] sm:$0xff]
    %v486 = vld [vmem:[#allocation7 + $0x318] sm:$0xff]
    %v487 = vld [vmem:[#allocation7 + $0x320] sm:$0xff]
    %v488 = vld [vmem:[#allocation7 + $0x328] sm:$0xff]
    %v489 = vld [vmem:[#allocation7 + $0x330] sm:$0xff]
    %v490 = vld [vmem:[#allocation7 + $0x338] sm:$0xff]
    %v491 = vld [vmem:[#allocation7 + $0x340] sm:$0xff]
    %v492 = vld [vmem:[#allocation7 + $0x348] sm:$0xff]
    %v493 = vld [vmem:[#allocation7 + $0x350] sm:$0xff]
    %v494 = vld [vmem:[#allocation7 + $0x358] sm:$0xff]
    %v495 = vld [vmem:[#allocation7 + $0x360] sm:$0xff]
    %v496 = vld [vmem:[#allocation7 + $0x368] sm:$0xff]
    %v497 = vld [vmem:[#allocation7 + $0x370] sm:$0xff]
    %v498 = vld [vmem:[#allocation7 + $0x378] sm:$0xff]
    %v499 = vld [vmem:[#allocation7 + $0x380] sm:$0xff]
    %v500 = vld [vmem:[#allocation7 + $0x388] sm:$0xff]
    %v501 = vld [vmem:[#allocation7 + $0x390] sm:$0xff]
    %v502 = vld [vmem:[#allocation7 + $0x398] sm:$0xff]
    %v503 = vld [vmem:[#allocation7 + $0x3a0] sm:$0xff]
    %v504 = vld [vmem:[#allocation7 + $0x3a8] sm:$0xff]
    %v505 = vld [vmem:[#allocation7 + $0x3b0] sm:$0xff]
    %v506 = vld [vmem:[#allocation7 + $0x3b8] sm:$0xff]
    %v507 = vld [vmem:[#allocation7 + $0x3c0] sm:$0xff]
    %v508 = vld [vmem:[#allocation7 + $0x3c8] sm:$0xff]
    %v509 = vld [vmem:[#allocation7 + $0x3d0] sm:$0xff]
    %v510 = vld [vmem:[#allocation7 + $0x3d8] sm:$0xff]
    %v511 = vld [vmem:[#allocation7 + $0x3e0] sm:$0xff]
    %v512 = vld [vmem:[#allocation7 + $0x3e8] sm:$0xff]
    %v513 = vld [vmem:[#allocation7 + $0x3f0] sm:$0xff]
    %v514 = vld [vmem:[#allocation7 + $0x3f8] sm:$0xff]
    %v516 = vlaneseq
    %v517 = vshrl.u32 %v516, 7
    %v518 = vsub.s32 0, %v517
    %v519 = vrot.slane %v62, %v518
    %v520 = vlaneseq
    %v521 = vshrl.u32 %v520, 7
    %v522 = vsub.s32 1, %v521
    %v523 = vrot.slane %v62, %v522
    %v654 = vunpack.c.l.b16 %v387
    %v655 = vunpack.c.h.b16 %v387
    %v656 = vunpack.c.l.b16 %v388
    %v657 = vunpack.c.h.b16 %v388
    %v658 = vunpack.c.l.b16 %v389
    %v659 = vunpack.c.h.b16 %v389
    %v660 = vunpack.c.l.b16 %v390
    %v661 = vunpack.c.h.b16 %v390
    %v662 = vunpack.c.l.b16 %v391
    %v663 = vunpack.c.h.b16 %v391
    %v664 = vunpack.c.l.b16 %v392
    %v665 = vunpack.c.h.b16 %v392
    %v666 = vunpack.c.l.b16 %v393
    %v667 = vunpack.c.h.b16 %v393
    %v668 = vunpack.c.l.b16 %v394
    %v669 = vunpack.c.h.b16 %v394
    %v670 = vunpack.c.l.b16 %v395
    %v671 = vunpack.c.h.b16 %v395
    %v672 = vunpack.c.l.b16 %v396
    %v673 = vunpack.c.h.b16 %v396
    %v674 = vunpack.c.l.b16 %v397
    %v675 = vunpack.c.h.b16 %v397
    %v676 = vunpack.c.l.b16 %v398
    %v677 = vunpack.c.h.b16 %v398
    %v678 = vunpack.c.l.b16 %v399
    %v679 = vunpack.c.h.b16 %v399
    %v680 = vunpack.c.l.b16 %v400
    %v681 = vunpack.c.h.b16 %v400
    %v682 = vunpack.c.l.b16 %v401
    %v683 = vunpack.c.h.b16 %v401
    %v684 = vunpack.c.l.b16 %v402
    %v685 = vunpack.c.h.b16 %v402
    %v686 = vunpack.c.l.b16 %v403
    %v687 = vunpack.c.h.b16 %v403
    %v688 = vunpack.c.l.b16 %v404
    %v689 = vunpack.c.h.b16 %v404
    %v690 = vunpack.c.l.b16 %v405
    %v691 = vunpack.c.h.b16 %v405
    %v692 = vunpack.c.l.b16 %v406
    %v693 = vunpack.c.h.b16 %v406
    %v694 = vunpack.c.l.b16 %v407
    %v695 = vunpack.c.h.b16 %v407
    %v696 = vunpack.c.l.b16 %v408
    %v697 = vunpack.c.h.b16 %v408
    %v698 = vunpack.c.l.b16 %v409
    %v699 = vunpack.c.h.b16 %v409
    %v700 = vunpack.c.l.b16 %v410
    %v701 = vunpack.c.h.b16 %v410
    %v702 = vunpack.c.l.b16 %v411
    %v703 = vunpack.c.h.b16 %v411
    %v704 = vunpack.c.l.b16 %v412
    %v705 = vunpack.c.h.b16 %v412
    %v706 = vunpack.c.l.b16 %v413
    %v707 = vunpack.c.h.b16 %v413
    %v708 = vunpack.c.l.b16 %v414
    %v709 = vunpack.c.h.b16 %v414
    %v710 = vunpack.c.l.b16 %v415
    %v711 = vunpack.c.h.b16 %v415
    %v712 = vunpack.c.l.b16 %v416
    %v713 = vunpack.c.h.b16 %v416
    %v714 = vunpack.c.l.b16 %v417
    %v715 = vunpack.c.h.b16 %v417
    %v716 = vunpack.c.l.b16 %v418
    %v717 = vunpack.c.h.b16 %v418
    %v718 = vunpack.c.l.b16 %v419
    %v719 = vunpack.c.h.b16 %v419
    %v720 = vunpack.c.l.b16 %v420
    %v721 = vunpack.c.h.b16 %v420
    %v722 = vunpack.c.l.b16 %v421
    %v723 = vunpack.c.h.b16 %v421
    %v724 = vunpack.c.l.b16 %v422
    %v725 = vunpack.c.h.b16 %v422
    %v726 = vunpack.c.l.b16 %v423
    %v727 = vunpack.c.h.b16 %v423
    %v728 = vunpack.c.l.b16 %v424
    %v729 = vunpack.c.h.b16 %v424
    %v730 = vunpack.c.l.b16 %v425
    %v731 = vunpack.c.h.b16 %v425
    %v732 = vunpack.c.l.b16 %v426
    %v733 = vunpack.c.h.b16 %v426
    %v734 = vunpack.c.l.b16 %v427
    %v735 = vunpack.c.h.b16 %v427
    %v736 = vunpack.c.l.b16 %v428
    %v737 = vunpack.c.h.b16 %v428
    %v738 = vunpack.c.l.b16 %v429
    %v739 = vunpack.c.h.b16 %v429
    %v740 = vunpack.c.l.b16 %v430
    %v741 = vunpack.c.h.b16 %v430
    %v742 = vunpack.c.l.b16 %v431
    %v743 = vunpack.c.h.b16 %v431
    %v744 = vunpack.c.l.b16 %v432
    %v745 = vunpack.c.h.b16 %v432
    %v746 = vunpack.c.l.b16 %v433
    %v747 = vunpack.c.h.b16 %v433
    %v748 = vunpack.c.l.b16 %v434
    %v749 = vunpack.c.h.b16 %v434
    %v750 = vunpack.c.l.b16 %v435
    %v751 = vunpack.c.h.b16 %v435
    %v752 = vunpack.c.l.b16 %v436
    %v753 = vunpack.c.h.b16 %v436
    %v754 = vunpack.c.l.b16 %v437
    %v755 = vunpack.c.h.b16 %v437
    %v756 = vunpack.c.l.b16 %v438
    %v757 = vunpack.c.h.b16 %v438
    %v758 = vunpack.c.l.b16 %v439
    %v759 = vunpack.c.h.b16 %v439
    %v760 = vunpack.c.l.b16 %v440
    %v761 = vunpack.c.h.b16 %v440
    %v762 = vunpack.c.l.b16 %v441
    %v763 = vunpack.c.h.b16 %v441
    %v764 = vunpack.c.l.b16 %v442
    %v765 = vunpack.c.h.b16 %v442
    %v766 = vunpack.c.l.b16 %v443
    %v767 = vunpack.c.h.b16 %v443
    %v768 = vunpack.c.l.b16 %v444
    %v769 = vunpack.c.h.b16 %v444
    %v770 = vunpack.c.l.b16 %v445
    %v771 = vunpack.c.h.b16 %v445
    %v772 = vunpack.c.l.b16 %v446
    %v773 = vunpack.c.h.b16 %v446
    %v774 = vunpack.c.l.b16 %v447
    %v775 = vunpack.c.h.b16 %v447
    %v776 = vunpack.c.l.b16 %v448
    %v777 = vunpack.c.h.b16 %v448
    %v778 = vunpack.c.l.b16 %v449
    %v779 = vunpack.c.h.b16 %v449
    %v780 = vunpack.c.l.b16 %v450
    %v781 = vunpack.c.h.b16 %v450
    %v782 = vunpack.c.l.b16 %v451
    %v783 = vunpack.c.h.b16 %v451
    %v784 = vunpack.c.l.b16 %v452
    %v785 = vunpack.c.h.b16 %v452
    %v786 = vunpack.c.l.b16 %v453
    %v787 = vunpack.c.h.b16 %v453
    %v788 = vunpack.c.l.b16 %v454
    %v789 = vunpack.c.h.b16 %v454
    %v790 = vunpack.c.l.b16 %v455
    %v791 = vunpack.c.h.b16 %v455
    %v792 = vunpack.c.l.b16 %v456
    %v793 = vunpack.c.h.b16 %v456
    %v794 = vunpack.c.l.b16 %v457
    %v795 = vunpack.c.h.b16 %v457
    %v796 = vunpack.c.l.b16 %v458
    %v797 = vunpack.c.h.b16 %v458
    %v798 = vunpack.c.l.b16 %v459
    %v799 = vunpack.c.h.b16 %v459
    %v800 = vunpack.c.l.b16 %v460
    %v801 = vunpack.c.h.b16 %v460
    %v802 = vunpack.c.l.b16 %v461
    %v803 = vunpack.c.h.b16 %v461
    %v804 = vunpack.c.l.b16 %v462
    %v805 = vunpack.c.h.b16 %v462
    %v806 = vunpack.c.l.b16 %v463
    %v807 = vunpack.c.h.b16 %v463
    %v808 = vunpack.c.l.b16 %v464
    %v809 = vunpack.c.h.b16 %v464
    %v810 = vunpack.c.l.b16 %v465
    %v811 = vunpack.c.h.b16 %v465
    %v812 = vunpack.c.l.b16 %v466
    %v813 = vunpack.c.h.b16 %v466
    %v814 = vunpack.c.l.b16 %v467
    %v815 = vunpack.c.h.b16 %v467
    %v816 = vunpack.c.l.b16 %v468
    %v817 = vunpack.c.h.b16 %v468
    %v818 = vunpack.c.l.b16 %v469
    %v819 = vunpack.c.h.b16 %v469
    %v820 = vunpack.c.l.b16 %v470
    %v821 = vunpack.c.h.b16 %v470
    %v822 = vunpack.c.l.b16 %v471
    %v823 = vunpack.c.h.b16 %v471
    %v824 = vunpack.c.l.b16 %v472
    %v825 = vunpack.c.h.b16 %v472
    %v826 = vunpack.c.l.b16 %v473
    %v827 = vunpack.c.h.b16 %v473
    %v828 = vunpack.c.l.b16 %v474
    %v829 = vunpack.c.h.b16 %v474
    %v830 = vunpack.c.l.b16 %v475
    %v831 = vunpack.c.h.b16 %v475
    %v832 = vunpack.c.l.b16 %v476
    %v833 = vunpack.c.h.b16 %v476
    %v834 = vunpack.c.l.b16 %v477
    %v835 = vunpack.c.h.b16 %v477
    %v836 = vunpack.c.l.b16 %v478
    %v837 = vunpack.c.h.b16 %v478
    %v838 = vunpack.c.l.b16 %v479
    %v839 = vunpack.c.h.b16 %v479
    %v840 = vunpack.c.l.b16 %v480
    %v841 = vunpack.c.h.b16 %v480
    %v842 = vunpack.c.l.b16 %v481
    %v843 = vunpack.c.h.b16 %v481
    %v844 = vunpack.c.l.b16 %v482
    %v845 = vunpack.c.h.b16 %v482
    %v846 = vunpack.c.l.b16 %v483
    %v847 = vunpack.c.h.b16 %v483
    %v848 = vunpack.c.l.b16 %v484
    %v849 = vunpack.c.h.b16 %v484
    %v850 = vunpack.c.l.b16 %v485
    %v851 = vunpack.c.h.b16 %v485
    %v852 = vunpack.c.l.b16 %v486
    %v853 = vunpack.c.h.b16 %v486
    %v854 = vunpack.c.l.b16 %v487
    %v855 = vunpack.c.h.b16 %v487
    %v856 = vunpack.c.l.b16 %v488
    %v857 = vunpack.c.h.b16 %v488
    %v858 = vunpack.c.l.b16 %v489
    %v859 = vunpack.c.h.b16 %v489
    %v860 = vunpack.c.l.b16 %v490
    %v861 = vunpack.c.h.b16 %v490
    %v862 = vunpack.c.l.b16 %v491
    %v863 = vunpack.c.h.b16 %v491
    %v864 = vunpack.c.l.b16 %v492
    %v865 = vunpack.c.h.b16 %v492
    %v866 = vunpack.c.l.b16 %v493
    %v867 = vunpack.c.h.b16 %v493
    %v868 = vunpack.c.l.b16 %v494
    %v869 = vunpack.c.h.b16 %v494
    %v870 = vunpack.c.l.b16 %v495
    %v871 = vunpack.c.h.b16 %v495
    %v872 = vunpack.c.l.b16 %v496
    %v873 = vunpack.c.h.b16 %v496
    %v874 = vunpack.c.l.b16 %v497
    %v875 = vunpack.c.h.b16 %v497
    %v876 = vunpack.c.l.b16 %v498
    %v877 = vunpack.c.h.b16 %v498
    %v878 = vunpack.c.l.b16 %v499
    %v879 = vunpack.c.h.b16 %v499
    %v880 = vunpack.c.l.b16 %v500
    %v881 = vunpack.c.h.b16 %v500
    %v882 = vunpack.c.l.b16 %v501
    %v883 = vunpack.c.h.b16 %v501
    %v884 = vunpack.c.l.b16 %v502
    %v885 = vunpack.c.h.b16 %v502
    %v886 = vunpack.c.l.b16 %v503
    %v887 = vunpack.c.h.b16 %v503
    %v888 = vunpack.c.l.b16 %v504
    %v889 = vunpack.c.h.b16 %v504
    %v890 = vunpack.c.l.b16 %v505
    %v891 = vunpack.c.h.b16 %v505
    %v892 = vunpack.c.l.b16 %v506
    %v893 = vunpack.c.h.b16 %v506
    %v894 = vunpack.c.l.b16 %v507
    %v895 = vunpack.c.h.b16 %v507
    %v896 = vunpack.c.l.b16 %v508
    %v897 = vunpack.c.h.b16 %v508
    %v898 = vunpack.c.l.b16 %v509
    %v899 = vunpack.c.h.b16 %v509
    %v900 = vunpack.c.l.b16 %v510
    %v901 = vunpack.c.h.b16 %v510
    %v902 = vunpack.c.l.b16 %v511
    %v903 = vunpack.c.h.b16 %v511
    %v904 = vunpack.c.l.b16 %v512
    %v905 = vunpack.c.h.b16 %v512
    %v906 = vunpack.c.l.b16 %v513
    %v907 = vunpack.c.h.b16 %v513
    %v908 = vunpack.c.l.b16 %v514
    %v909 = vunpack.c.h.b16 %v514
    %v910 = vpack.c.b16 %v656, %v654
    %v911 = vpack.c.b16 %v657, %v655
    %v912 = vpack.c.b16 %v660, %v658
    %v913 = vpack.c.b16 %v661, %v659
    %v914 = vpack.c.b16 %v664, %v662
    %v915 = vpack.c.b16 %v665, %v663
    %v916 = vpack.c.b16 %v668, %v666
    %v917 = vpack.c.b16 %v669, %v667
    %v918 = vpack.c.b16 %v672, %v670
    %v919 = vpack.c.b16 %v673, %v671
    %v920 = vpack.c.b16 %v676, %v674
    %v921 = vpack.c.b16 %v677, %v675
    %v922 = vpack.c.b16 %v680, %v678
    %v923 = vpack.c.b16 %v681, %v679
    %v924 = vpack.c.b16 %v684, %v682
    %v925 = vpack.c.b16 %v685, %v683
    %v926 = vpack.c.b16 %v688, %v686
    %v927 = vpack.c.b16 %v689, %v687
    %v928 = vpack.c.b16 %v692, %v690
    %v929 = vpack.c.b16 %v693, %v691
    %v930 = vpack.c.b16 %v696, %v694
    %v931 = vpack.c.b16 %v697, %v695
    %v932 = vpack.c.b16 %v700, %v698
    %v933 = vpack.c.b16 %v701, %v699
    %v934 = vpack.c.b16 %v704, %v702
    %v935 = vpack.c.b16 %v705, %v703
    %v936 = vpack.c.b16 %v708, %v706
    %v937 = vpack.c.b16 %v709, %v707
    %v938 = vpack.c.b16 %v712, %v710
    %v939 = vpack.c.b16 %v713, %v711
    %v940 = vpack.c.b16 %v716, %v714
    %v941 = vpack.c.b16 %v717, %v715
    %v942 = vpack.c.b16 %v720, %v718
    %v943 = vpack.c.b16 %v721, %v719
    %v944 = vpack.c.b16 %v724, %v722
    %v945 = vpack.c.b16 %v725, %v723
    %v946 = vpack.c.b16 %v728, %v726
    %v947 = vpack.c.b16 %v729, %v727
    %v948 = vpack.c.b16 %v732, %v730
    %v949 = vpack.c.b16 %v733, %v731
    %v950 = vpack.c.b16 %v736, %v734
    %v951 = vpack.c.b16 %v737, %v735
    %v952 = vpack.c.b16 %v740, %v738
    %v953 = vpack.c.b16 %v741, %v739
    %v954 = vpack.c.b16 %v744, %v742
    %v955 = vpack.c.b16 %v745, %v743
    %v956 = vpack.c.b16 %v748, %v746
    %v957 = vpack.c.b16 %v749, %v747
    %v958 = vpack.c.b16 %v752, %v750
    %v959 = vpack.c.b16 %v753, %v751
    %v960 = vpack.c.b16 %v756, %v754
    %v961 = vpack.c.b16 %v757, %v755
    %v962 = vpack.c.b16 %v760, %v758
    %v963 = vpack.c.b16 %v761, %v759
    %v964 = vpack.c.b16 %v764, %v762
    %v965 = vpack.c.b16 %v765, %v763
    %v966 = vpack.c.b16 %v768, %v766
    %v967 = vpack.c.b16 %v769, %v767
    %v968 = vpack.c.b16 %v772, %v770
    %v969 = vpack.c.b16 %v773, %v771
    %v970 = vpack.c.b16 %v776, %v774
    %v971 = vpack.c.b16 %v777, %v775
    %v972 = vpack.c.b16 %v780, %v778
    %v973 = vpack.c.b16 %v781, %v779
    %v974 = vpack.c.b16 %v784, %v782
    %v975 = vpack.c.b16 %v785, %v783
    %v976 = vpack.c.b16 %v788, %v786
    %v977 = vpack.c.b16 %v789, %v787
    %v978 = vpack.c.b16 %v792, %v790
    %v979 = vpack.c.b16 %v793, %v791
    %v980 = vpack.c.b16 %v796, %v794
    %v981 = vpack.c.b16 %v797, %v795
    %v982 = vpack.c.b16 %v800, %v798
    %v983 = vpack.c.b16 %v801, %v799
    %v984 = vpack.c.b16 %v804, %v802
    %v985 = vpack.c.b16 %v805, %v803
    %v986 = vpack.c.b16 %v808, %v806
    %v987 = vpack.c.b16 %v809, %v807
    %v988 = vpack.c.b16 %v812, %v810
    %v989 = vpack.c.b16 %v813, %v811
    %v990 = vpack.c.b16 %v816, %v814
    %v991 = vpack.c.b16 %v817, %v815
    %v992 = vpack.c.b16 %v820, %v818
    %v993 = vpack.c.b16 %v821, %v819
    %v994 = vpack.c.b16 %v824, %v822
    %v995 = vpack.c.b16 %v825, %v823
    %v996 = vpack.c.b16 %v828, %v826
    %v997 = vpack.c.b16 %v829, %v827
    %v998 = vpack.c.b16 %v832, %v830
    %v999 = vpack.c.b16 %v833, %v831
    %v1000 = vpack.c.b16 %v836, %v834
    %v1001 = vpack.c.b16 %v837, %v835
    %v1002 = vpack.c.b16 %v840, %v838
    %v1003 = vpack.c.b16 %v841, %v839
    %v1004 = vpack.c.b16 %v844, %v842
    %v1005 = vpack.c.b16 %v845, %v843
    %v1006 = vpack.c.b16 %v848, %v846
    %v1007 = vpack.c.b16 %v849, %v847
    %v1008 = vpack.c.b16 %v852, %v850
    %v1009 = vpack.c.b16 %v853, %v851
    %v1010 = vpack.c.b16 %v856, %v854
    %v1011 = vpack.c.b16 %v857, %v855
    %v1012 = vpack.c.b16 %v860, %v858
    %v1013 = vpack.c.b16 %v861, %v859
    %v1014 = vpack.c.b16 %v864, %v862
    %v1015 = vpack.c.b16 %v865, %v863
    %v1016 = vpack.c.b16 %v868, %v866
    %v1017 = vpack.c.b16 %v869, %v867
    %v1018 = vpack.c.b16 %v872, %v870
    %v1019 = vpack.c.b16 %v873, %v871
    %v1020 = vpack.c.b16 %v876, %v874
    %v1021 = vpack.c.b16 %v877, %v875
    %v1022 = vpack.c.b16 %v880, %v878
    %v1023 = vpack.c.b16 %v881, %v879
    %v1024 = vpack.c.b16 %v884, %v882
    %v1025 = vpack.c.b16 %v885, %v883
    %v1026 = vpack.c.b16 %v888, %v886
    %v1027 = vpack.c.b16 %v889, %v887
    %v1028 = vpack.c.b16 %v892, %v890
    %v1029 = vpack.c.b16 %v893, %v891
    %v1030 = vpack.c.b16 %v896, %v894
    %v1031 = vpack.c.b16 %v897, %v895
    %v1032 = vpack.c.b16 %v900, %v898
    %v1033 = vpack.c.b16 %v901, %v899
    %v1034 = vpack.c.b16 %v904, %v902
    %v1035 = vpack.c.b16 %v905, %v903
    %v1036 = vpack.c.b16 %v908, %v906
    %v1037 = vpack.c.b16 %v909, %v907
    %1166 = vmatprep.subr.bf16.mxu0 %v911
    %1167 = vmatpush1.bf16.msra.mxu0 %v910
    %1168 = vmatprep.subr.bf16.mxu0 %v913
    %1169 = vmatpush1.bf16.msra.mxu0 %v912
    %1170 = vmatprep.subr.bf16.mxu0 %v915
    %1171 = vmatpush1.bf16.msra.mxu0 %v914
    %1172 = vmatprep.subr.bf16.mxu0 %v917
    %1173 = vmatpush1.bf16.msra.mxu0 %v916
    %1174 = vmatprep.subr.bf16.mxu0 %v919
    %1175 = vmatpush1.bf16.msra.mxu0 %v918
    %1176 = vmatprep.subr.bf16.mxu0 %v921
    %1177 = vmatpush1.bf16.msra.mxu0 %v920
    %1178 = vmatprep.subr.bf16.mxu0 %v923
    %1179 = vmatpush1.bf16.msra.mxu0 %v922
    %1180 = vmatprep.subr.bf16.mxu0 %v925
    %1181 = vmatpush1.bf16.msra.mxu0 %v924
    %1182 = vmatprep.subr.bf16.mxu0 %v927
    %1183 = vmatpush1.bf16.msra.mxu0 %v926
    %1184 = vmatprep.subr.bf16.mxu0 %v929
    %1185 = vmatpush1.bf16.msra.mxu0 %v928
    %1186 = vmatprep.subr.bf16.mxu0 %v931
    %1187 = vmatpush1.bf16.msra.mxu0 %v930
    %1188 = vmatprep.subr.bf16.mxu0 %v933
    %1189 = vmatpush1.bf16.msra.mxu0 %v932
    %1190 = vmatprep.subr.bf16.mxu0 %v935
    %1191 = vmatpush1.bf16.msra.mxu0 %v934
    %1192 = vmatprep.subr.bf16.mxu0 %v937
    %1193 = vmatpush1.bf16.msra.mxu0 %v936
    %1194 = vmatprep.subr.bf16.mxu0 %v939
    %1195 = vmatpush1.bf16.msra.mxu0 %v938
    %1196 = vmatprep.subr.bf16.mxu0 %v941
    %1197 = vmatpush1.bf16.msra.mxu0 %v940
    %1198 = vmatprep.mubr.bf16.mxu0 %v380
    %1199 = vmatmul.mubr.bf16.gmra.mrb[0].mxu0 %v379
    %v1200 = vpop.f32.mrb[0].mxu0
    %v1201 = vadd.f32 %v519, %v1200
    %v1202 = vpop.f32.mrb[0].mxu0
    %v1203 = vadd.f32 %v523, %v1202
    %v1204 = vpop.f32.mrb[0].mxu0
    %v1205 = vpop.f32.mrb[0].mxu0
    %1206 = vdwg.mxu0
    %1207 = vmatprep.subr.bf16.mxu0 %v943
    %1208 = vmatpush1.bf16.msra.mxu0 %v942
    %1209 = vmatprep.subr.bf16.mxu0 %v945
    %1210 = vmatpush1.bf16.msra.mxu0 %v944
    %1211 = vmatprep.subr.bf16.mxu0 %v947
    %1212 = vmatpush1.bf16.msra.mxu0 %v946
    %1213 = vmatprep.subr.bf16.mxu0 %v949
    %1214 = vmatpush1.bf16.msra.mxu0 %v948
    %1215 = vmatprep.subr.bf16.mxu0 %v951
    %1216 = vmatpush1.bf16.msra.mxu0 %v950
    %1217 = vmatprep.subr.bf16.mxu0 %v953
    %1218 = vmatpush1.bf16.msra.mxu0 %v952
    %1219 = vmatprep.subr.bf16.mxu0 %v955
    %1220 = vmatpush1.bf16.msra.mxu0 %v954
    %1221 = vmatprep.subr.bf16.mxu0 %v957
    %1222 = vmatpush1.bf16.msra.mxu0 %v956
    %1223 = vmatprep.subr.bf16.mxu0 %v959
    %1224 = vmatpush1.bf16.msra.mxu0 %v958
    %1225 = vmatprep.subr.bf16.mxu0 %v961
    %1226 = vmatpush1.bf16.msra.mxu0 %v960
    %1227 = vmatprep.subr.bf16.mxu0 %v963
    %1228 = vmatpush1.bf16.msra.mxu0 %v962
    %1229 = vmatprep.subr.bf16.mxu0 %v965
    %1230 = vmatpush1.bf16.msra.mxu0 %v964
    %1231 = vmatprep.subr.bf16.mxu0 %v967
    %1232 = vmatpush1.bf16.msra.mxu0 %v966
    %1233 = vmatprep.subr.bf16.mxu0 %v969
    %1234 = vmatpush1.bf16.msra.mxu0 %v968
    %1235 = vmatprep.subr.bf16.mxu0 %v971
    %1236 = vmatpush1.bf16.msra.mxu0 %v970
    %1237 = vmatprep.subr.bf16.mxu0 %v973
    %1238 = vmatpush1.bf16.msra.mxu0 %v972
    %1239 = vmatprep.mubr.bf16.mxu0 %v382
    %1240 = vmatmul.mubr.bf16.gmra.mrb[0].mxu0 %v381
    %v1241 = vpop.f32.mrb[0].mxu0
    %v1242 = vadd.f32 %v1201, %v1241
    %v1243 = vpop.f32.mrb[0].mxu0
    %v1244 = vadd.f32 %v1203, %v1243
    %v1245 = vpop.f32.mrb[0].mxu0
    %v1246 = vpop.f32.mrb[0].mxu0
    %1247 = vdwg.mxu0
    %1248 = vmatprep.subr.bf16.mxu0 %v975
    %1249 = vmatpush1.bf16.msra.mxu0 %v974
    %1250 = vmatprep.subr.bf16.mxu0 %v977
    %1251 = vmatpush1.bf16.msra.mxu0 %v976
    %1252 = vmatprep.subr.bf16.mxu0 %v979
    %1253 = vmatpush1.bf16.msra.mxu0 %v978
    %1254 = vmatprep.subr.bf16.mxu0 %v981
    %1255 = vmatpush1.bf16.msra.mxu0 %v980
    %1256 = vmatprep.subr.bf16.mxu0 %v983
    %1257 = vmatpush1.bf16.msra.mxu0 %v982
    %1258 = vmatprep.subr.bf16.mxu0 %v985
    %1259 = vmatpush1.bf16.msra.mxu0 %v984
    %1260 = vmatprep.subr.bf16.mxu0 %v987
    %1261 = vmatpush1.bf16.msra.mxu0 %v986
    %1262 = vmatprep.subr.bf16.mxu0 %v989
    %1263 = vmatpush1.bf16.msra.mxu0 %v988
    %1264 = vmatprep.subr.bf16.mxu0 %v991
    %1265 = vmatpush1.bf16.msra.mxu0 %v990
    %1266 = vmatprep.subr.bf16.mxu0 %v993
    %1267 = vmatpush1.bf16.msra.mxu0 %v992
    %1268 = vmatprep.subr.bf16.mxu0 %v995
    %1269 = vmatpush1.bf16.msra.mxu0 %v994
    %1270 = vmatprep.subr.bf16.mxu0 %v997
    %1271 = vmatpush1.bf16.msra.mxu0 %v996
    %1272 = vmatprep.subr.bf16.mxu0 %v999
    %1273 = vmatpush1.bf16.msra.mxu0 %v998
    %1274 = vmatprep.subr.bf16.mxu0 %v1001
    %1275 = vmatpush1.bf16.msra.mxu0 %v1000
    %1276 = vmatprep.subr.bf16.mxu0 %v1003
    %1277 = vmatpush1.bf16.msra.mxu0 %v1002
    %1278 = vmatprep.subr.bf16.mxu0 %v1005
    %1279 = vmatpush1.bf16.msra.mxu0 %v1004
    %1280 = vmatprep.mubr.bf16.mxu0 %v384
    %1281 = vmatmul.mubr.bf16.gmra.mrb[0].mxu0 %v383
    %v1282 = vpop.f32.mrb[0].mxu0
    %v1283 = vadd.f32 %v1242, %v1282
    %v1284 = vpop.f32.mrb[0].mxu0
    %v1285 = vadd.f32 %v1244, %v1284
    %v1286 = vpop.f32.mrb[0].mxu0
    %v1287 = vpop.f32.mrb[0].mxu0
    %1288 = vdwg.mxu0
    %1289 = vmatprep.subr.bf16.mxu0 %v1007
    %1290 = vmatpush1.bf16.msra.mxu0 %v1006
    %1291 = vmatprep.subr.bf16.mxu0 %v1009
    %1292 = vmatpush1.bf16.msra.mxu0 %v1008
    %1293 = vmatprep.subr.bf16.mxu0 %v1011
    %1294 = vmatpush1.bf16.msra.mxu0 %v1010
    %1295 = vmatprep.subr.bf16.mxu0 %v1013
    %1296 = vmatpush1.bf16.msra.mxu0 %v1012
    %1297 = vmatprep.subr.bf16.mxu0 %v1015
    %1298 = vmatpush1.bf16.msra.mxu0 %v1014
    %1299 = vmatprep.subr.bf16.mxu0 %v1017
    %1300 = vmatpush1.bf16.msra.mxu0 %v1016
    %1301 = vmatprep.subr.bf16.mxu0 %v1019
    %1302 = vmatpush1.bf16.msra.mxu0 %v1018
    %1303 = vmatprep.subr.bf16.mxu0 %v1021
    %1304 = vmatpush1.bf16.msra.mxu0 %v1020
    %1305 = vmatprep.subr.bf16.mxu0 %v1023
    %1306 = vmatpush1.bf16.msra.mxu0 %v1022
    %1307 = vmatprep.subr.bf16.mxu0 %v1025
    %1308 = vmatpush1.bf16.msra.mxu0 %v1024
    %1309 = vmatprep.subr.bf16.mxu0 %v1027
    %1310 = vmatpush1.bf16.msra.mxu0 %v1026
    %1311 = vmatprep.subr.bf16.mxu0 %v1029
    %1312 = vmatpush1.bf16.msra.mxu0 %v1028
    %1313 = vmatprep.subr.bf16.mxu0 %v1031
    %1314 = vmatpush1.bf16.msra.mxu0 %v1030
    %1315 = vmatprep.subr.bf16.mxu0 %v1033
    %1316 = vmatpush1.bf16.msra.mxu0 %v1032
    %1317 = vmatprep.subr.bf16.mxu0 %v1035
    %1318 = vmatpush1.bf16.msra.mxu0 %v1034
    %1319 = vmatprep.subr.bf16.mxu0 %v1037
    %1320 = vmatpush1.bf16.msra.mxu0 %v1036
    %1321 = vmatprep.mubr.bf16.mxu0 %v386
    %1322 = vmatmul.mubr.bf16.gmra.mrb[0].mxu0 %v385
    %v1323 = vpop.f32.mrb[0].mxu0
    %v1324 = vadd.f32 %v1283, %v1323
    %v1325 = vpop.f32.mrb[0].mxu0
    %v1326 = vadd.f32 %v1285, %v1325
    %v1327 = vpop.f32.mrb[0].mxu0
    %v1328 = vpop.f32.mrb[0].mxu0
    %1329 = vdwg.mxu0
    %v1330 = vtanh.pop %v1324
    %v1331 = vtanh.pop %v1326
    %v1332 = vld [vmem:[%s3] sm:$0x3]
    %v1333 = vunpack.c.l.bf16 %v1332
    %v1335 = vlaneseq
    %v1336 = vshrl.u32 %v1335, 7
    %v1337 = vsub.s32 0, %v1336
    %v1338 = vrot.slane %v1333, %v1337
    %v1339 = vlaneseq
    %v1340 = vshrl.u32 %v1339, 7
    %v1341 = vsub.s32 2, %v1340
    %v1342 = vrot.slane %v1333, %v1341
    %v1345 = vlaneseq
    %v1346 = vshrl.u32 %v1345, 7
    %v1347 = vsub.s32 0, %v1346
    %v1348 = vrot.slane %v1338, %v1347
    %v1349 = vlaneseq
    %v1350 = vshrl.u32 %v1349, 7
    %v1351 = vsub.s32 0, %v1350
    %v1352 = vrot.slane %v1342, %v1351
    %v1353 = vmul.f32 %v1330, %v1348
    %v1354 = vmul.f32 %v1331, %v1352
    %v1355 = vadd.f32 %v1353, %v1354
    %1356 = vadd.xlane.f32.xlu0 %v1355
    %v1357 = vpop.xlane.xlu0 %1356
    %1359 = vset.pattern.permute.xlu0 0
    %1360 = vperm.xlu0 %1359, %v63
    %v1361 = vpop.permute.xlu0 %1360
    %v1363 = vlaneseq
    %v1364 = vshrl.u32 %v1363, 7
    %v1365 = vsub.s32 0, %v1364
    %v1366 = vrot.slane %v1361, %v1365
    %v1367 = vadd.f32 %v1357, %v1366
    %v1369 = vlaneseq
    %v1370 = vand.u32 %v1369, 127
    %v1371 = vlaneseq
    %v1372 = vshrl.u32 %v1371, 7
    %v1373 = vsub.s32 %v1370, %v1372
    %v1374 = vrot.slane %v1367, %v1373
    %vm1376 = vcmask 57344
    %1377 = vst.msk [vmem:[#allocation8] sm:$0x1] %vm1376, %v1374
    // Predicated region
    $region34: #{tpu_custom_call.1} parent=1 // pred_check
      _
    $region35: #{tpu_custom_call.1} parent=1 // pred_check_branch
      %1379 = sbr.rel (0) target = $region37
    $region36: #{tpu_custom_call.1} parent=1 // pred_region
      %s1381 = ssub.s32 16, 16
      %1382 = vsyncadd [#allocation4], %s1381
      %s1384 = sshll.u32 [#allocation8], 4
      %s1385 = int_to_ptr.vmem [resolvable:$true] %s1384
      %1387 = dma.vmem_to_hbm [thread:$0]  %s1385, 16, %s5, [#allocation4]
    $region37: #{tpu_custom_call.1} parent=1 // pred_fallthru
      _
    // Predicated region
    $region38: #{tpu_custom_call.1} parent=1 // pred_check
      _
    $region39: #{tpu_custom_call.1} parent=1 // pred_check_branch
      %1389 = sbr.rel (0) target = $region41
    $region40: #{tpu_custom_call.1} parent=1 // pred_region
      %1390 = dma.done [#allocation4], 16
    $region41: #{tpu_custom_call.1} parent=1 // pred_fallthru
      _
    %1391 = vsyncpa [#allocation3], 1
    %1392 = vsyncpa [#allocation6], 1
    %1393 = vsyncpa [#allocation4], 1

</llo_original>
